<compile_context>
chip_gen: v7x
topology: tpu7x:2x2x1
jax: 0.10.0
libtpu: 0.0.40
codegen_flags: <defaults>
</compile_context>

<pallas_src>
import math

import numpy as np
import jax
import jax.numpy as jnp
from jax.experimental import pallas as pl
from jax.experimental.pallas import tpu as pltpu


def _labels_kernel(x_ref, ct_ref, c2_ref, lrow_ref, lcol_ref):
    # x_ref:    (T, d)   -- row block of x for this (b, i)
    # ct_ref:   (d, K)   f32 centers, transposed (grid-invariant)
    # c2_ref:   (1, K)   f32 ||c||^2 (grid-invariant)
    # lrow_ref: (1, T)   int32, lane-dense labels row
    # lcol_ref: (T, 1)   int32, labels column (so the mask kernel needs no XLU)
    x = x_ref[...].astype(jnp.float32)
    ct = ct_ref[...]
    c2 = c2_ref[...]
    T = x.shape[0]
    K = ct.shape[1]

    # ||x||^2 is constant per row -> dropping it leaves argmin unchanged:
    #   dist_eff = ||c||^2 - 2 x.c   (all f32)
    xc = jnp.dot(x, ct, preferred_element_type=jnp.float32)       # (T, K) MXU
    dist = c2 - 2.0 * xc                                          # (T, K)
    idx = jax.lax.broadcasted_iota(jnp.int32, (T, K), 1)
    min_d = jnp.min(dist, axis=-1, keepdims=True)
    # first-occurrence tie break (matches np.argmin / sklearn)
    cand = jnp.where(dist <= min_d, idx, K)
    lab_col = jnp.min(cand, axis=-1, keepdims=True)                # (T, 1) i32

    lcol_ref[...] = lab_col
    lrow_ref[...] = jnp.transpose(lab_col, (1, 0))                 # (1, T)


def _mask_kernel(qcol_ref, krow_ref, w_ref):
    # qcol_ref: (Tq, 1) int32 ; krow_ref: (1, Tk) int32 ; w_ref: (Tq, Tk)
    # Pure VPU broadcast-equality + store: this kernel is writeback-bound.
    w_ref[...] = (qcol_ref[...] == krow_ref[...]).astype(w_ref.dtype)


def _pick_tile(seq, pref, out_itemsize):
    """Largest 128-multiple tile <= pref that keeps the double-buffered
    (T, T) output tile within a conservative VMEM budget; full seq if small."""
    budget = 16 * 1024 * 1024                       # safe on every generation
    try:
        vmem = pltpu.get_tpu_info().vmem_capacity_bytes
        budget = min(budget, vmem // 4)
    except Exception:
        pass
    t_cap = int(math.isqrt(max(budget // (2 * out_itemsize), 128 * 128)))
    t_cap = max(128, (t_cap // 128) * 128)
    t = max(128, (min(pref, t_cap) // 128) * 128)
    if seq <= t:
        return seq                                  # full-dim block is legal
    return t                                        # ragged edge handled by cdiv


def cluster_forward(learning_state, centers_pool, *,
                    weight_dtype=jnp.bfloat16, max_tile=1024):
    """learning_state: (bs, seq, d_model); centers_pool: (K, d_model).

    Returns (state_weight (bs, seq, seq), predicted_labels (bs, seq) int32).
    The mask is exactly 0/1, so the default bf16 output is lossless; pass
    weight_dtype=jnp.float32 to match the PyTorch dtype bit-for-bit.
    """
    x = jnp.asarray(learning_state)
    if x.dtype not in (jnp.dtype(jnp.float32), jnp.dtype(jnp.bfloat16)):
        x = x.astype(jnp.float32)
    bs, seq, d = x.shape

    cf = jnp.asarray(centers_pool, jnp.float32)                    # (K, d)
    K = cf.shape[0]
    ct = cf.T                                                      # (d, K) f32
    c2 = jnp.sum(cf * cf, axis=-1)[None, :]                        # (1, K) f32

    x_isz = np.dtype(x.dtype).itemsize
    w_isz = np.dtype(weight_dtype).itemsize
    T = _pick_tile(seq, max_tile, w_isz)
    n = int(pl.cdiv(seq, T))

    # ---------------- Pass 1: nearest-center labels (x touched exactly once) -
    lab_cost = pl.CostEstimate(
        flops=2 * bs * seq * d * K + 6 * bs * seq * K,
        transcendentals=0,
        bytes_accessed=bs * seq * d * x_isz + 2 * bs * seq * 4 + (d + 1) * K * 4)

    labels_row, labels_col = pl.pallas_call(
        _labels_kernel,
        out_shape=(jax.ShapeDtypeStruct((bs, 1, seq), jnp.int32),
                   jax.ShapeDtypeStruct((bs, seq, 1), jnp.int32)),
        grid_spec=pltpu.PrefetchScalarGridSpec(
            num_scalar_prefetch=0,
            grid=(bs, n),
            in_specs=[
                pl.BlockSpec((None, T, d), lambda b, i: (b, i, 0)),
                pl.BlockSpec((d, K), lambda b, i: (0, 0)),
                pl.BlockSpec((1, K), lambda b, i: (0, 0)),
            ],
            out_specs=[
                pl.BlockSpec((None, 1, T), lambda b, i: (b, 0, i)),
                pl.BlockSpec((None, T, 1), lambda b, i: (b, i, 0)),
            ]),
        compiler_params=pltpu.CompilerParams(
            dimension_semantics=("parallel", "parallel")),
        cost_estimate=lab_cost,
    )(x, ct, c2)

    # ---------------- Pass 2: (bs, seq, seq) equality mask (writeback-bound) -
    mask_cost = pl.CostEstimate(
        flops=bs * seq * seq,
        transcendentals=0,
        bytes_accessed=bs * seq * seq * w_isz + 2 * bs * n * seq * 4)

    weight = pl.pallas_call(
        _mask_kernel,
        out_shape=jax.ShapeDtypeStruct((bs, seq, seq), weight_dtype),
        grid_spec=pltpu.PrefetchScalarGridSpec(
            num_scalar_prefetch=0,
            grid=(bs, n, n),
            in_specs=[
                pl.BlockSpec((None, T, 1), lambda b, qi, ki: (b, qi, 0)),
                pl.BlockSpec((None, 1, T), lambda b, qi, ki: (b, 0, ki)),
            ],
            out_specs=pl.BlockSpec((None, T, T), lambda b, qi, ki: (b, qi, ki))),
        compiler_params=pltpu.CompilerParams(
            dimension_semantics=("parallel", "parallel", "parallel")),
        cost_estimate=mask_cost,
    )(labels_col, labels_row)

    predicted_labels = labels_row[:, 0, :]                         # (bs, seq)
    return weight, predicted_labels


if __name__ == "__main__":
    def run_and_check(x, centers, weight_dtype, max_tile):
        sw, lb = cluster_forward(x, centers,
                                 weight_dtype=weight_dtype, max_tile=max_tile)
        sw = np.asarray(jax.block_until_ready(sw), dtype=np.float32)
        lb = np.asarray(jax.block_until_ready(lb))
        bs, seq, d = x.shape
        K = centers.shape[0]

        assert lb.shape == (bs, seq)
        assert sw.shape == (bs, seq, seq)
        assert np.all((lb >= 0) & (lb < K))

        # reference nearest-center assignment (numpy, full Euclidean distance)
        xr = np.asarray(x, np.float32).reshape(-1, d)
        cr = np.asarray(centers, np.float32)
        dref = ((xr[:, None, :] - cr[None, :, :]) ** 2).sum(-1)
        lref = dref.argmin(-1).reshape(bs, seq)
        assert np.array_equal(lb, lref)

        # mask consistent with labels, symmetric, self-match on the diagonal
        ref_mask = (lb[:, :, None] == lb[:, None, :]).astype(np.float32)
        assert np.array_equal(sw, ref_mask)
        assert np.all(np.diagonal(sw, axis1=1, axis2=2) == 1.0)
        assert np.all(sw == np.transpose(sw, (0, 2, 1)))

    key = jax.random.PRNGKey(0)
    k1, k2, k3, k4, k5, k6 = jax.random.split(key, 6)

    # Small shape matching the module defaults (bs=2, seq=8, d_model=32, K=5)
    x_small = jax.random.normal(k1, (2, 8, 32), jnp.float32)
    c_small = jax.random.normal(k2, (5, 32), jnp.float32)  # stand-in for randn
    run_and_check(x_small, c_small, jnp.float32, max_tile=1024)

    # Larger shape exercising the tiled (qi, ki) grid and bf16 mask output
    x_big = jax.random.normal(k3, (2, 256, 32), jnp.float32)
    c_big = jax.random.normal(k4, (5, 32), jnp.float32)
    run_and_check(x_big, c_big, jnp.bfloat16, max_tile=128)

    # Non-divisible seq exercising the cdiv ragged-edge path
    x_rag = jax.random.normal(k5, (2, 200, 32), jnp.float32)
    c_rag = jax.random.normal(k6, (5, 32), jnp.float32)
    run_and_check(x_rag, c_rag, jnp.bfloat16, max_tile=128)

    print("KERNEL_OK")
</pallas_src>

<mosaic_0001>
module attributes {stable_mosaic.version = 11 : i64} {
  func.func @_labels_kernel(%arg0: i32, %arg1: i32, %arg2: memref<1x8x32xf32, #tpu.memory_space<vmem>>, %arg3: memref<32x5xf32, #tpu.memory_space<vmem>>, %arg4: memref<1x5xf32, #tpu.memory_space<vmem>>, %arg5: memref<1x1x8xi32, #tpu.memory_space<vmem>>, %arg6: memref<1x8x1xi32, #tpu.memory_space<vmem>>) attributes {dimension_semantics = [#tpu.dimension_semantics<parallel>, #tpu.dimension_semantics<parallel>], iteration_bounds = array<i64: 2, 1>, scalar_prefetch = 0 : i64, scratch_operands = 0 : i64, tpu.core_type = #tpu.core_type<tc>, window_params = [{transform_indices = @transform_0, window_bounds = array<i64: 1, 8, 32>}, {pipeline_mode = #tpu.pipeline_mode<synchronous>, transform_indices = @transform_1, window_bounds = array<i64: 32, 5>}, {pipeline_mode = #tpu.pipeline_mode<synchronous>, transform_indices = @transform_2, window_bounds = array<i64: 1, 5>}, {transform_indices = @transform_3, window_bounds = array<i64: 1, 1, 8>}, {transform_indices = @transform_4, window_bounds = array<i64: 1, 8, 1>}]} {
    %c0 = arith.constant 0 : index
    %c0_0 = arith.constant 0 : index
    %c0_1 = arith.constant 0 : index
    %0 = vector.load %arg2[%c0, %c0_0, %c0_1] : memref<1x8x32xf32, #tpu.memory_space<vmem>>, vector<1x8x32xf32>
    %1 = vector.shape_cast %0 : vector<1x8x32xf32> to vector<8x32xf32>
    %c0_2 = arith.constant 0 : index
    %c0_3 = arith.constant 0 : index
    %2 = vector.load %arg3[%c0_2, %c0_3] : memref<32x5xf32, #tpu.memory_space<vmem>>, vector<32x5xf32>
    %c0_4 = arith.constant 0 : index
    %c0_5 = arith.constant 0 : index
    %3 = vector.load %arg4[%c0_4, %c0_5] : memref<1x5xf32, #tpu.memory_space<vmem>>, vector<1x5xf32>
    %cst = arith.constant dense<0.000000e+00> : vector<8x5xf32>
    %4 = tpu.matmul %1, %2, %cst {dimension_numbers = #tpu.dot_dimension_numbers<[1], [0], [0], [1], [0, 0, 1, 1], [], []>} : vector<8x32xf32>, vector<32x5xf32>, vector<8x5xf32> -> vector<8x5xf32>
    %cst_6 = arith.constant 2.000000e+00 : f32
    %5 = vector.broadcast %cst_6 : f32 to vector<8x5xf32>
    %6 = arith.mulf %5, %4 : vector<8x5xf32>
    %7 = vector.broadcast %3 : vector<1x5xf32> to vector<8x5xf32>
    %8 = arith.subf %7, %6 : vector<8x5xf32>
    %9 = tpu.iota {dimensions = array<i32: 1>} : vector<8x5xi32>
    %cst_7 = arith.constant dense<0x7F800000> : vector<8xf32>
    %10 = vector.multi_reduction <minimumf>, %8, %cst_7 [1] : vector<8x5xf32> to vector<8xf32>
    %11 = vector.shape_cast %10 : vector<8xf32> to vector<8x1xf32>
    %12 = vector.broadcast %11 : vector<8x1xf32> to vector<8x5xf32>
    %13 = arith.cmpf ole, %8, %12 : vector<8x5xf32>
    %c5_i32 = arith.constant 5 : i32
    %14 = vector.broadcast %c5_i32 : i32 to vector<8x5xi32>
    %15 = arith.select %13, %9, %14 : vector<8x5xi1>, vector<8x5xi32>
    %cst_8 = arith.constant dense<2147483647> : vector<8xi32>
    %16 = vector.multi_reduction <minsi>, %15, %cst_8 [1] : vector<8x5xi32> to vector<8xi32>
    %17 = vector.shape_cast %16 : vector<8xi32> to vector<8x1xi32>
    %c0_9 = arith.constant 0 : index
    %c0_10 = arith.constant 0 : index
    %c0_11 = arith.constant 0 : index
    %18 = vector.load %arg6[%c0_9, %c0_10, %c0_11] : memref<1x8x1xi32, #tpu.memory_space<vmem>>, vector<1x8x1xi32>
    %19 = vector.shape_cast %18 : vector<1x8x1xi32> to vector<8x1xi32>
    %20 = vector.shape_cast %17 : vector<8x1xi32> to vector<1x8x1xi32>
    tpu.vector_store %arg6[%c0_9, %c0_10, %c0_11], %20 {strides = array<i32>} : memref<1x8x1xi32, #tpu.memory_space<vmem>>, vector<1x8x1xi32>,
    %21 = tpu.transpose %17, [1, 0] : vector<8x1xi32> -> vector<1x8xi32>
    %c0_12 = arith.constant 0 : index
    %c0_13 = arith.constant 0 : index
    %c0_14 = arith.constant 0 : index
    %22 = vector.load %arg5[%c0_12, %c0_13, %c0_14] : memref<1x1x8xi32, #tpu.memory_space<vmem>>, vector<1x1x8xi32>
    %23 = vector.shape_cast %22 : vector<1x1x8xi32> to vector<1x8xi32>
    %24 = vector.shape_cast %21 : vector<1x8xi32> to vector<1x1x8xi32>
    tpu.vector_store %arg5[%c0_12, %c0_13, %c0_14], %24 {strides = array<i32>} : memref<1x1x8xi32, #tpu.memory_space<vmem>>, vector<1x1x8xi32>,
    return
  }
  func.func @transform_0(%arg0: i32, %arg1: i32) -> (i32, i32, i32) {
    %c0_i32 = arith.constant 0 : i32
    %c0_i32_0 = arith.constant 0 : i32
    return %arg0, %arg1, %c0_i32 : i32, i32, i32
  }
  func.func @transform_1(%arg0: i32, %arg1: i32) -> (i32, i32) {
    %c0_i32 = arith.constant 0 : i32
    %c0_i32_0 = arith.constant 0 : i32
    %c0_i32_1 = arith.constant 0 : i32
    return %c0_i32, %c0_i32_0 : i32, i32
  }
  func.func @transform_2(%arg0: i32, %arg1: i32) -> (i32, i32) {
    %c0_i32 = arith.constant 0 : i32
    %c0_i32_0 = arith.constant 0 : i32
    %c0_i32_1 = arith.constant 0 : i32
    return %c0_i32, %c0_i32_0 : i32, i32
  }
  func.func @transform_3(%arg0: i32, %arg1: i32) -> (i32, i32, i32) {
    %c0_i32 = arith.constant 0 : i32
    %c0_i32_0 = arith.constant 0 : i32
    return %arg0, %c0_i32, %arg1 : i32, i32, i32
  }
  func.func @transform_4(%arg0: i32, %arg1: i32) -> (i32, i32, i32) {
    %c0_i32 = arith.constant 0 : i32
    %c0_i32_0 = arith.constant 0 : i32
    return %arg0, %arg1, %c0_i32 : i32, i32, i32
  }
}

</mosaic_0001>

<llo_original>
// kernel: tpu_custom_call.1
$region0: #{tpu_custom_call.1}
  #allocation0 [shape = 'u32[]', space=smem, size = 0x4, offset = 0x4, fixed_abs, tag = 'smem constant byte address 0x4 - core index']
  #allocation1 [shape = 'u32[144,128]{1,0:T(1,128)}', space=vmem, size = 0x12000, scoped, tag = 'internal scratch']
  %s0 = inlined_call_operand.vmem [shape: f32[2,8,32], index: 0, kind: input, shape index: {}]
  %s1 = inlined_call_operand.vmem [shape: f32[32,5], index: 1, kind: input, shape index: {}]
  %s2 = inlined_call_operand.vmem [shape: f32[1,5], index: 2, kind: input, shape index: {}]
  %s3 = inlined_call_operand.hbm [shape: s32[2,1,8], index: 3, kind: output, shape index: {0}]
  %s4 = inlined_call_operand.vmem [shape: s32[2,8,1], index: 4, kind: output, shape index: {1}]
  %5 = xla_tuple %s3, %s4
  %s6 = sld [smem:[#allocation0]]
  $region53: #{tpu_custom_call.1} parent=0
    _
  %s8 = ssub.s32 1, %s6
  %s9 = scalar_select 0, %s8, %s6
  $region1: #{tpu_custom_call.1} parent=0
    #allocation2 [shape = 'u8[1024]{0}', space=vmem, size = 0x400, scoped, tag = 'output window, operand 0']
    #allocation3 [shape = 's32[2]{0}', space=sflag, size = 0x8, scoped, tag = 'scoped memory for tpu_custom_call.1']
    %10 = vsyncpa [#allocation3], 0
    %s11 = scalar_lea.sflag [#allocation3], 1
    %12 = vsyncpa %s11, 0
    loop: start=0, step=1, limit=4
    $region2: #{tpu_custom_call.1} parent=1 // loop_pre_header
      _
    $region3: #{tpu_custom_call.1} parent=1 // loop_header
      %s14 = sphi 0, %s18
      %p15 = scmp.ge.s32.totalorder %s14, 4
      %s21 = sphi 0, %s33
      %s22 = sphi 0, %s29
      %s23 = sphi 0, %s21
      %s24 = sphi 0, %s22
      %s25 = sphi 0, %s23
      %s26 = sphi 0, %s24
      %s38 = sphi 0, %s40
      %s41 = sphi 0, %s38
      %s42 = sphi 0, %s41
      %s58 = sphi 0, %s42
      %s62 = sphi 0, %s62
      %s64 = sphi 0, %s62
      %s65 = sphi 0, %s64
      %s79 = sphi 0, %s65
      %s83 = sphi 0, %s83
      %s85 = sphi 0, %s83
      %s86 = sphi 0, %s85
      %s100 = sphi 0, %s86
      %s108 = sphi 0, %s110
      %s111 = sphi 0, %s108
      %s112 = sphi 0, %s111
      %s128 = sphi 0, %s112
      %s136 = sphi 0, %s138
      %s139 = sphi 0, %s136
      %s140 = sphi 0, %s139
      %s156 = sphi 0, %s140
    $region4: #{tpu_custom_call.1} parent=1 // loop_header_branch
      %17 = sbr.rel (%p15) target = $region8
    $region5: #{tpu_custom_call.1} parent=1 // loop_body
      %s19 = ssub.s32 %s14, 1
      %s20 = ssub.s32 %s14, 2
      %s27 = sadd.s32 1, %s22
      %p28 = scmp.ge.s32.totalorder %s27, 1
      %s29 = scalar_select %p28, 0, %s27
      %s30 = sadd.s32 1, %s21
      %s31 = scalar_select %p28, %s30, %s21
      %p32 = scmp.ge.s32.totalorder %s31, 2
      %s33 = scalar_select %p32, 0, %s31
      %s34 = ssub.s32 %s21, %s33
      %s35 = ssub.s32 %s22, %s29
      %s36 = sor.u32 %s34, %s35
      %p37 = scmp.eq.s32.totalorder %s36, 0
      %s39 = sadd.s32 %s38, 1
      %s40 = scalar_select %p37, %s38, %s39
      %p43 = pneg %p37
      %p44 = scmp.eq.s32.totalorder %s14, 1
      %p45 = por %p43, %p44
      %p46 = scmp.ne.s32.totalorder %s38, %s41
      %p47 = scmp.eq.s32.totalorder %s14, 0
      %p48 = por %p46, %p47
      %p49 = scmp.ne.s32.totalorder %s38, %s41
      %p50 = scmp.eq.s32.totalorder %s19, 1
      %p51 = por %p49, %p50
      %p52 = scmp.ne.s32.totalorder %s41, %s42
      %p53 = scmp.eq.s32.totalorder %s19, 0
      %p54 = por %p52, %p53
      %p55 = scmp.ne.s32.totalorder %s41, %s42
      %p56 = scmp.eq.s32.totalorder %s20, 1
      %p57 = por %p55, %p56
      %p59 = scmp.ne.s32.totalorder %s42, %s58
      %p60 = scmp.eq.s32.totalorder %s20, 0
      %p61 = por %p59, %p60
      %s63 = sadd.s32 %s62, 1
      %p66 = scmp.eq.s32.totalorder %s14, 1
      %p67 = scmp.ne.s32.totalorder %s62, %s64
      %p68 = scmp.eq.s32.totalorder %s14, 0
      %p69 = por %p67, %p68
      %p70 = scmp.ne.s32.totalorder %s62, %s64
      %p71 = scmp.eq.s32.totalorder %s19, 1
      %p72 = por %p70, %p71
      %p73 = scmp.ne.s32.totalorder %s64, %s65
      %p74 = scmp.eq.s32.totalorder %s19, 0
      %p75 = por %p73, %p74
      %p76 = scmp.ne.s32.totalorder %s64, %s65
      %p77 = scmp.eq.s32.totalorder %s20, 1
      %p78 = por %p76, %p77
      %p80 = scmp.ne.s32.totalorder %s65, %s79
      %p81 = scmp.eq.s32.totalorder %s20, 0
      %p82 = por %p80, %p81
      %s84 = sadd.s32 %s83, 1
      %p87 = scmp.eq.s32.totalorder %s14, 1
      %p88 = scmp.ne.s32.totalorder %s83, %s85
      %p89 = scmp.eq.s32.totalorder %s14, 0
      %p90 = por %p88, %p89
      %p91 = scmp.ne.s32.totalorder %s83, %s85
      %p92 = scmp.eq.s32.totalorder %s19, 1
      %p93 = por %p91, %p92
      %p94 = scmp.ne.s32.totalorder %s85, %s86
      %p95 = scmp.eq.s32.totalorder %s19, 0
      %p96 = por %p94, %p95
      %p97 = scmp.ne.s32.totalorder %s85, %s86
      %p98 = scmp.eq.s32.totalorder %s20, 1
      %p99 = por %p97, %p98
      %p101 = scmp.ne.s32.totalorder %s86, %s100
      %p102 = scmp.eq.s32.totalorder %s20, 0
      %p103 = por %p101, %p102
      %s104 = ssub.s32 %s21, %s33
      %s105 = ssub.s32 %s22, %s29
      %s106 = sor.u32 %s104, %s105
      %p107 = scmp.eq.s32.totalorder %s106, 0
      %s109 = sadd.s32 %s108, 1
      %s110 = scalar_select %p107, %s108, %s109
      %p113 = pneg %p107
      %p114 = scmp.eq.s32.totalorder %s14, 1
      %p115 = por %p113, %p114
      %p116 = scmp.ne.s32.totalorder %s108, %s111
      %p117 = scmp.eq.s32.totalorder %s14, 0
      %p118 = por %p116, %p117
      %p119 = scmp.ne.s32.totalorder %s108, %s111
      %p120 = scmp.eq.s32.totalorder %s19, 1
      %p121 = por %p119, %p120
      %p122 = scmp.ne.s32.totalorder %s111, %s112
      %p123 = scmp.eq.s32.totalorder %s19, 0
      %p124 = por %p122, %p123
      %p125 = scmp.ne.s32.totalorder %s111, %s112
      %p126 = scmp.eq.s32.totalorder %s20, 1
      %p127 = por %p125, %p126
      %p129 = scmp.ne.s32.totalorder %s112, %s128
      %p130 = scmp.eq.s32.totalorder %s20, 0
      %p131 = por %p129, %p130
      %s132 = ssub.s32 %s21, %s33
      %s133 = ssub.s32 %s22, %s29
      %s134 = sor.u32 %s132, %s133
      %p135 = scmp.eq.s32.totalorder %s134, 0
      %s137 = sadd.s32 %s136, 1
      %s138 = scalar_select %p135, %s136, %s137
      %p141 = pneg %p135
      %p142 = scmp.eq.s32.totalorder %s14, 1
      %p143 = por %p141, %p142
      %p144 = scmp.ne.s32.totalorder %s136, %s139
      %p145 = scmp.eq.s32.totalorder %s14, 0
      %p146 = por %p144, %p145
      %p147 = scmp.ne.s32.totalorder %s136, %s139
      %p148 = scmp.eq.s32.totalorder %s19, 1
      %p149 = por %p147, %p148
      %p150 = scmp.ne.s32.totalorder %s139, %s140
      %p151 = scmp.eq.s32.totalorder %s19, 0
      %p152 = por %p150, %p151
      %p153 = scmp.ne.s32.totalorder %s139, %s140
      %p154 = scmp.eq.s32.totalorder %s20, 1
      %p155 = por %p153, %p154
      %p157 = scmp.ne.s32.totalorder %s140, %s156
      %p158 = scmp.eq.s32.totalorder %s20, 0
      %p159 = por %p157, %p158
      %p160 = scmp.le.s32.totalorder 1, %s14
      %p161 = scmp.lt.s32.totalorder %s14, 3
      %p162 = pnand %p160, %p161
      %p163 = pneg %p162
      // Predicated region
      $region9: #{tpu_custom_call.1} parent=5 // pred_check
        _
      $region10: #{tpu_custom_call.1} parent=5 // pred_check_branch
        %165 = sbr.rel (%p162) target = $region12
      $region11: #{tpu_custom_call.1} parent=5 // pred_region
        %s166 = ssub.s32 %s14, 1
        // Predicated region
        $region13: #{tpu_custom_call.1} parent=11 // pred_check
          %p167 = pneg %p75
        $region14: #{tpu_custom_call.1} parent=11 // pred_check_branch
          %169 = sbr.rel (%p167) target = $region16
        $region15: #{tpu_custom_call.1} parent=11 // pred_region
          _
        $region16: #{tpu_custom_call.1} parent=11 // pred_fallthru
          _
        // Predicated region
        $region17: #{tpu_custom_call.1} parent=11 // pred_check
          %p170 = pneg %p96
        $region18: #{tpu_custom_call.1} parent=11 // pred_check_branch
          %172 = sbr.rel (%p170) target = $region20
        $region19: #{tpu_custom_call.1} parent=11 // pred_region
          _
        $region20: #{tpu_custom_call.1} parent=11 // pred_fallthru
          _
      $region12: #{tpu_custom_call.1} parent=5 // pred_fallthru
        _
      %p173 = scmp.lt.s32.totalorder %s14, 2
      // Predicated region
      $region21: #{tpu_custom_call.1} parent=5 // pred_check
        %p174 = pneg %p173
      $region22: #{tpu_custom_call.1} parent=5 // pred_check_branch
        %176 = sbr.rel (%p174) target = $region24
      $region23: #{tpu_custom_call.1} parent=5 // pred_region
        // Predicated region
        $region25: #{tpu_custom_call.1} parent=23 // pred_check
          %p177 = pneg %p48
        $region26: #{tpu_custom_call.1} parent=23 // pred_check_branch
          %179 = sbr.rel (%p177) target = $region28
        $region27: #{tpu_custom_call.1} parent=23 // pred_region
          %p180 = scmp.lt.s32.totalorder %s21, 1
          %s181 = scalar_select %p180, %s21, 1
          %p182 = scmp.lt.s32.totalorder %s22, 0
          %s183 = scalar_select %p182, %s22, 0
          %s184 = sadd.s32 %s183, %s181
          %s185 = smul.addr %s184, 8
          %s186 = scalar_lea.vmem %s0, %s185
        $region28: #{tpu_custom_call.1} parent=23 // pred_fallthru
          _
      $region24: #{tpu_custom_call.1} parent=5 // pred_fallthru
        _
      %p187 = scmp.le.s32.totalorder 1, %s14
      %p188 = scmp.lt.s32.totalorder %s14, 3
      %p189 = pnand %p187, %p188
      %p190 = pneg %p189
      // Predicated region
      $region29: #{tpu_custom_call.1} parent=5 // pred_check
        _
      $region30: #{tpu_custom_call.1} parent=5 // pred_check_branch
        %192 = sbr.rel (%p189) target = $region32
      $region31: #{tpu_custom_call.1} parent=5 // pred_region
        %s193 = ssub.s32 %s14, 1
        %p194 = scmp.lt.s32.totalorder %s23, 1
        %s195 = scalar_select %p194, %s23, 1
        %p196 = scmp.lt.s32.totalorder %s24, 0
        %s197 = scalar_select %p196, %s24, 0
        %s198 = sadd.s32 %s197, %s195
        %s199 = smul.addr %s198, 8
        %s200 = scalar_lea.vmem %s0, %s199
        %p201 = pneg %p54
        %p202 = pneg %p51
        %p203 = pneg %p75
        %p204 = pneg %p72
        %p205 = pneg %p96
        %p206 = pneg %p93
        %p207 = pneg %p124
        %p208 = pneg %p121
        %s209 = sand.u32 %s111, 1
        %s210 = scalar_lea.sflag [#allocation3], %s209
        %s211 = sand.u32 %s111, 1
        %s212 = scalar_lea.vmem [#allocation2], %s211
        %p213 = pneg %p152
        %p214 = pneg %p149
        %p215 = scmp.lt.s32.totalorder %s23, 1
        %s216 = scalar_select %p215, %s23, 1
        %p217 = scmp.lt.s32.totalorder %s24, 0
        %s218 = scalar_select %p217, %s24, 0
        %s219 = sadd.s32 %s218, %s216
        %s220 = smul.addr %s219, 8
        %s221 = scalar_lea.vmem %s4, %s220
        %p222 = scmp.lt.s32.totalorder %s23, 1
        %s223 = scalar_select %p222, %s23, 1
        %p224 = scmp.lt.s32.totalorder %s24, 0
        %s225 = scalar_select %p224, %s24, 0
        %s226 = sadd.s32 %s225, %s223
        %s227 = smul.addr %s226, 8
        %s228 = scalar_lea.vmem %s0, %s227
        %p229 = scmp.lt.s32.totalorder %s23, 1
        %s230 = scalar_select %p229, %s23, 1
        %p231 = scmp.lt.s32.totalorder %s24, 0
        %s232 = scalar_select %p231, %s24, 0
        %s233 = sadd.s32 %s232, %s230
        %s234 = smul.addr %s233, 8
        %s235 = scalar_lea.vmem %s4, %s234
        %v236 = vld [vmem:[%s228] sm:$0xff]
        %v237 = vld [vmem:[%s1] sm:$0xff]
        %v238 = vld [vmem:[%s1 + $0x8] sm:$0xff]
        %v239 = vld [vmem:[%s1 + $0x10] sm:$0xff]
        %v240 = vld [vmem:[%s1 + $0x18] sm:$0xff]
        %v241 = vld [vmem:[%s2] sm:$0x1]
        %vm242 = vcmask 261120
        %v244 = vsel %vm242, %v236, 0
        %246 = vmatprep.subr.mxu0 0.0
        %247 = vmatpush1.msra.mxu0 %v237
        %248 = vmatprep.subr.mxu0 0.0
        %249 = vmatpush1.msra.mxu0 %v238
        %250 = vmatprep.subr.mxu0 0.0
        %251 = vmatpush1.msra.mxu0 %v239
        %252 = vmatprep.subr.mxu0 0.0
        %253 = vmatpush1.msra.mxu0 %v240
        %254 = vmatprep.subr.mxu0 0.0
        %255 = vmatpush1.msra.mxu0 0.0
        %256 = vmatprep.subr.mxu0 0.0
        %257 = vmatpush1.msra.mxu0 0.0
        %258 = vmatprep.subr.mxu0 0.0
        %259 = vmatpush1.msra.mxu0 0.0
        %260 = vmatprep.subr.mxu0 0.0
        %261 = vmatpush1.msra.mxu0 0.0
        %262 = vmatprep.subr.mxu0 0.0
        %263 = vmatpush1.msra.mxu0 0.0
        %264 = vmatprep.subr.mxu0 0.0
        %265 = vmatpush1.msra.mxu0 0.0
        %266 = vmatprep.subr.mxu0 0.0
        %267 = vmatpush1.msra.mxu0 0.0
        %268 = vmatprep.subr.mxu0 0.0
        %269 = vmatpush1.msra.mxu0 0.0
        %270 = vmatprep.subr.mxu0 0.0
        %271 = vmatpush1.msra.mxu0 0.0
        %272 = vmatprep.subr.mxu0 0.0
        %273 = vmatpush1.msra.mxu0 0.0
        %274 = vmatprep.subr.mxu0 0.0
        %275 = vmatpush1.msra.mxu0 0.0
        %276 = vmatprep.subr.mxu0 0.0
        %277 = vmatpush1.msra.mxu0 0.0
        %278 = vmatprep.subr.mxu0 0.0
        %279 = vmatpush1.msra.mxu0 0.0
        %280 = vmatprep.subr.mxu0 0.0
        %281 = vmatpush1.msra.mxu0 0.0
        %282 = vmatprep.subr.mxu0 0.0
        %283 = vmatpush1.msra.mxu0 0.0
        %284 = vmatprep.subr.mxu0 0.0
        %285 = vmatpush1.msra.mxu0 0.0
        %286 = vmatprep.subr.mxu0 0.0
        %287 = vmatpush1.msra.mxu0 0.0
        %288 = vmatprep.subr.mxu0 0.0
        %289 = vmatpush1.msra.mxu0 0.0
        %290 = vmatprep.subr.mxu0 0.0
        %291 = vmatpush1.msra.mxu0 0.0
        %292 = vmatprep.subr.mxu0 0.0
        %293 = vmatpush1.msra.mxu0 0.0
        %294 = vmatprep.subr.mxu0 0.0
        %295 = vmatpush1.msra.mxu0 0.0
        %296 = vmatprep.subr.mxu0 0.0
        %297 = vmatpush1.msra.mxu0 0.0
        %298 = vmatprep.subr.mxu0 0.0
        %299 = vmatpush1.msra.mxu0 0.0
        %300 = vmatprep.subr.mxu0 0.0
        %301 = vmatpush1.msra.mxu0 0.0
        %302 = vmatprep.subr.mxu0 0.0
        %303 = vmatpush1.msra.mxu0 0.0
        %304 = vmatprep.subr.mxu0 0.0
        %305 = vmatpush1.msra.mxu0 0.0
        %306 = vmatprep.subr.mxu0 0.0
        %307 = vmatpush1.msra.mxu0 0.0
        %308 = vmatprep.subr.mxu0 0.0
        %309 = vmatpush1.msra.mxu0 0.0
        %310 = vmatprep.mubr.f32.mxu0 0.0
        %311 = vmatmul.mubr.f32.gmra.mrb[0].mxu0 %v244
        %v312 = vpop.f32.mrb[0].mxu0
        %v313 = vadd.f32 0.0, %v312
        %v314 = vpop.f32.mrb[0].mxu0
        %315 = vdwg.mxu0
        %v316 = vmul.f32 %v313, 2.0
        %v318 = vlaneseq
        %v319 = vshrl.u32 %v318, 7
        %v320 = vsub.s32 0, %v319
        %v321 = vrot.slane %v241, %v320
        %v323 = vsub.f32 %v321, %v316
        %v324 = vlaneseq
        %v325 = vand.u32 %v324, 127
        %vm326 = vcmask 39936
        %v327 = vsel %vm326, %v323, inf
        %328 = vmin.xlane.f32.xlu0 %v327
        %v329 = vpop.xlane.xlu0 %328
        %vm330 = vcmp.le.f32.partialorder %v323, %v329
        %v331 = vsel %vm330, %v325, 5
        %v332 = vsel %vm326, %v331, 2147483647
        %v333 = vand.u32 %v332, 65535
        %v334 = vshra.s32 %v332, 16
        %v335 = vcvt.s32.f32 %v333
        %v336 = vcvt.s32.f32 %v334
        %337 = vmin.xlane.f32.xlu0 %v336
        %v338 = vpop.xlane.xlu0 %337
        %vm339 = vcmp.eq.f32.partialorder %v336, %v338
        %v340 = vsel %vm339, %v335, inf
        %341 = vmin.xlane.f32.xlu0 %v340
        %v342 = vpop.xlane.xlu0 %341
        %v343 = vcvt.f32.s32 %v342
        %v344 = vcvt.f32.s32 %v338
        %v345 = vshll.u32 %v344, 16
        %v346 = vadd.s32 %v345, %v343
        %vm347 = vcmask 7168
        %348 = vst.msk [vmem:[%s235] sm:$0xff] %vm347, %v346
        %349 = vxpose.xlu0.b32.start [1/16] %v346, 128
        %350 = vxpose.xlu0.b32.cont [2/16] 0, 128
        %351 = vxpose.xlu0.b32.cont [3/16] 0, 128
        %352 = vxpose.xlu0.b32.cont [4/16] 0, 128
        %353 = vxpose.xlu0.b32.cont [5/16] 0, 128
        %354 = vxpose.xlu0.b32.cont [6/16] 0, 128
        %355 = vxpose.xlu0.b32.cont [7/16] 0, 128
        %356 = vxpose.xlu0.b32.cont [8/16] 0, 128
        %357 = vxpose.xlu0.b32.cont [9/16] 0, 128
        %358 = vxpose.xlu0.b32.cont [10/16] 0, 128
        %359 = vxpose.xlu0.b32.cont [11/16] 0, 128
        %360 = vxpose.xlu0.b32.cont [12/16] 0, 128
        %361 = vxpose.xlu0.b32.cont [13/16] 0, 128
        %362 = vxpose.xlu0.b32.cont [14/16] 0, 128
        %363 = vxpose.xlu0.b32.cont [15/16] 0, 128
        %364 = vxpose.xlu0.b32.end [16/16] 0, 128
        %v365 = vpop.trf.xlu0
        %v366 = vpop.trf.xlu0
        %v367 = vpop.trf.xlu0
        %v368 = vpop.trf.xlu0
        %v369 = vpop.trf.xlu0
        %v370 = vpop.trf.xlu0
        %v371 = vpop.trf.xlu0
        %v372 = vpop.trf.xlu0
        %v373 = vpop.trf.xlu0
        %v374 = vpop.trf.xlu0
        %v375 = vpop.trf.xlu0
        %v376 = vpop.trf.xlu0
        %v377 = vpop.trf.xlu0
        %v378 = vpop.trf.xlu0
        %v379 = vpop.trf.xlu0
        %v380 = vpop.trf.xlu0
        %vm381 = vcmask 57344
        %382 = vst.msk [vmem:[%s212] sm:$0x1] %vm381, %v365
        %s383 = sand.u32 %s111, 1
        %s384 = scalar_lea.sflag [#allocation3], %s383
        %s385 = sand.u32 %s111, 1
        %s386 = scalar_lea.vmem [#allocation2], %s385
        %p387 = scmp.lt.s32.totalorder %s23, 1
        %s388 = scalar_select %p387, %s23, 1
        %p389 = scmp.lt.s32.totalorder %s24, 0
        %s390 = scalar_select %p389, %s24, 0
        %s391 = sadd.s32 %s390, %s388
        %s392 = smul.addr %s391, 8
        %s393 = scalar_lea.vmem %s4, %s392
        // Predicated region
        $region33: #{tpu_custom_call.1} parent=31 // pred_check
          %p394 = pneg %p121
        $region34: #{tpu_custom_call.1} parent=31 // pred_check_branch
          %396 = sbr.rel (%p394) target = $region36
        $region35: #{tpu_custom_call.1} parent=31 // pred_region
          %s398 = ssub.s32 16, 16
          %399 = vsyncadd %s384, %s398
          %s400 = sadd.s32 %s24, %s23
          %s401 = smul.addr %s400, 16
          %s402 = scalar_lea.hbm %s3, %s401
          %s404 = sshll.u32 %s386, 4
          %s405 = int_to_ptr.vmem [resolvable:$true] %s404
          %407 = dma.vmem_to_hbm [thread:$0]  %s405, 16, %s402, %s384
        $region36: #{tpu_custom_call.1} parent=31 // pred_fallthru
          _
        // Predicated region
        $region37: #{tpu_custom_call.1} parent=31 // pred_check
          %p408 = pneg %p149
        $region38: #{tpu_custom_call.1} parent=31 // pred_check_branch
          %410 = sbr.rel (%p408) target = $region40
        $region39: #{tpu_custom_call.1} parent=31 // pred_region
          _
        $region40: #{tpu_custom_call.1} parent=31 // pred_fallthru
          _
      $region32: #{tpu_custom_call.1} parent=5 // pred_fallthru
        _
      %p411 = scmp.le.s32.totalorder 2, %s14
      // Predicated region
      $region41: #{tpu_custom_call.1} parent=5 // pred_check
        %p412 = pneg %p411
      $region42: #{tpu_custom_call.1} parent=5 // pred_check_branch
        %414 = sbr.rel (%p412) target = $region44
      $region43: #{tpu_custom_call.1} parent=5 // pred_region
        %s415 = ssub.s32 %s14, 2
        // Predicated region
        $region45: #{tpu_custom_call.1} parent=43 // pred_check
          %p416 = pneg %p127
        $region46: #{tpu_custom_call.1} parent=43 // pred_check_branch
          %418 = sbr.rel (%p416) target = $region48
        $region47: #{tpu_custom_call.1} parent=43 // pred_region
          %s419 = sand.u32 %s112, 1
          %s420 = scalar_lea.sflag [#allocation3], %s419
          %s421 = sand.u32 %s112, 1
          %s422 = scalar_lea.vmem [#allocation2], %s421
          %423 = dma.done %s420, 16
        $region48: #{tpu_custom_call.1} parent=43 // pred_fallthru
          _
        // Predicated region
        $region49: #{tpu_custom_call.1} parent=43 // pred_check
          %p424 = pneg %p155
        $region50: #{tpu_custom_call.1} parent=43 // pred_check_branch
          %426 = sbr.rel (%p424) target = $region52
        $region51: #{tpu_custom_call.1} parent=43 // pred_region
          %p427 = scmp.lt.s32.totalorder %s25, 1
          %s428 = scalar_select %p427, %s25, 1
          %p429 = scmp.lt.s32.totalorder %s26, 0
          %s430 = scalar_select %p429, %s26, 0
          %s431 = sadd.s32 %s430, %s428
          %s432 = smul.addr %s431, 8
          %s433 = scalar_lea.vmem %s4, %s432
        $region52: #{tpu_custom_call.1} parent=43 // pred_fallthru
          _
      $region44: #{tpu_custom_call.1} parent=5 // pred_fallthru
        _
    $region6: #{tpu_custom_call.1} parent=1 // loop_footer
      %s18 = sadd.s32 1, %s14
    $region7: #{tpu_custom_call.1} parent=1 // loop_footer_branch
      %13 = sbr.rel target = $region3
    $region8: #{tpu_custom_call.1} parent=1 // loop_exit
      _
    %434 = vsyncpa [#allocation3], 1
    %s435 = scalar_lea.sflag [#allocation3], 1
    %436 = vsyncpa %s435, 1

</llo_original>
